<compile_context>
chip_gen: v6e
topology: v6e:2x2x1
jax: 0.10.0
libtpu: 0.0.40
codegen_flags: <defaults>
</compile_context>

<pallas_src>
import functools

import jax
import jax.numpy as jnp
from jax.experimental import pallas as pl
from jax.experimental.pallas import tpu as pltpu


def mpnn_kernel(a_ref, feat_ref, whall_ref, wiall_ref, wmlp_ref, b_ref, out_ref,
                *, n_layers, n_nodes, in_feats, hid_feats, out_feats):
    N, F, H = n_nodes, in_feats, hid_feats
    GW = H + 3 * F                      # packed gate width (128 at these sizes)

    A = a_ref[...]                      # [N, N]   bf16 normalized adjacency (dst, src)
    feat = feat_ref[...]                # [N, F]   f32 input node features
    w_hall = whall_ref[...]             # [F, GW]  bf16  [wgc | whr | whz | whn]
    w_iall = wiall_ref[...]             # [H, GW]  bf16  [0   | wir | wiz | win]
    bp = b_ref[...]                     # [8, GW]  f32 packed biases

    # Hoisted bias broadcasts (loop below is unrolled; JAX does not CSE broadcast_in_dim).
    bgc_b = jnp.broadcast_to(bp[0:1, 0:H], (N, H))        # GraphConv bias
    bgate = jnp.broadcast_to(bp[1:2, :], (N, GW))          # [0 | b_r | b_z | b_in]
    bnh_b = jnp.broadcast_to(bp[2:3, 0:F], (N, F))         # b_hn (stays inside r*(...))

    def dotb(x, y):
        # bf16 MXU operands, f32 accumulation.
        return jnp.dot(x.astype(jnp.bfloat16), y.astype(jnp.bfloat16),
                       preferred_element_type=jnp.float32)

    # n_layers message-passing rounds, statically unrolled; h0 = feat.
    h = feat
    for _ in range(n_layers):
        hall = dotb(h, w_hall)                              # [N, GW] = [h@wgc | gh_r | gh_z | gh_n]
        # GraphConv:  m = relu(A_norm @ (h @ W_gc) + b_gc)  (lane-0 aligned slice of hall)
        m = jnp.maximum(dotb(A, hall[:, 0:H]) + bgc_b, 0.0)  # [N, H]
        # GRU cell: one packed input-gate matmul; gate lanes already aligned with hall's.
        gi = dotb(m, w_iall) + bgate                        # [N, GW] = [0 | gi_r+br | gi_z+bz | gi_n+bin]
        g = gi + hall                                       # lanes H:H+2F are full r/z pre-activations
        rz = jax.nn.sigmoid(g[:, H:H + 2 * F])              # one sigmoid over the packed r|z slab
        r = rz[:, 0:F]
        z = rz[:, F:2 * F]
        n = jnp.tanh(gi[:, H + 2 * F:H + 3 * F]             # already contains +b_in
                     + r * (hall[:, H + 2 * F:H + 3 * F] + bnh_b))
        h = (1.0 - z) * n + z * h

    # Readout: MLP([feat; h]) once; node-sum as a ones-row matmul; W2 on the 1-row sum.
    w1 = wmlp_ref[0]                                        # [F, out]  bf16
    w2 = wmlp_ref[1]                                        # [out, out] bf16
    stacked = jnp.concatenate([feat, h], axis=0)            # [2N, F]
    b1_b = jnp.broadcast_to(bp[3:4, 0:out_feats], (2 * N, out_feats))
    y1 = jnp.maximum(dotb(stacked, w1) + b1_b, 0.0)         # [2N, out]
    ones = jnp.ones((1, 2 * N), jnp.float32)
    s = dotb(ones, y1)                                      # [1, out]  node-sum on the MXU
    out_ref[...] = dotb(s, w2) + (2.0 * N) * bp[4:5, 0:out_feats]


def mpnn_forward(A_norm, feat, params, n_layers):
    N, in_feats = feat.shape
    hid_feats = params["wgc"].shape[1]
    out_feats = params["w2"].shape[1]
    F, H = in_feats, hid_feats
    GW = H + 3 * F
    bf = jnp.bfloat16

    # Fused hidden-side weights: one dot(h, .) per layer gives h@wgc AND all gh_* products.
    w_hall = jnp.concatenate(
        [params["wgc"], params["whr"], params["whz"], params["whn"]], axis=1).astype(bf)
    # Input-gate pack, front-padded by H zero lanes so gate lanes align with w_hall's
    # (padded lanes are never read for the update).
    w_iall = jnp.concatenate(
        [jnp.zeros((H, H), jnp.float32), params["wir"], params["wiz"], params["win"]],
        axis=1).astype(bf)
    w_mlp = jnp.stack([params["w1"], params["w2"]]).astype(bf)   # [2, F, out]

    # All seven bias rows packed into one [8, GW] f32 slab (one DMA instead of seven).
    b_pack = jnp.zeros((8, GW), jnp.float32)
    b_pack = b_pack.at[0, :H].set(params["bgc"][0])
    b_pack = b_pack.at[1, H:H + F].set(params["br"][0])
    b_pack = b_pack.at[1, H + F:H + 2 * F].set(params["bz"][0])
    b_pack = b_pack.at[1, H + 2 * F:H + 3 * F].set(params["bin"][0])
    b_pack = b_pack.at[2, :F].set(params["bhn"][0])
    b_pack = b_pack.at[3, :out_feats].set(params["b1"][0])
    b_pack = b_pack.at[4, :out_feats].set(params["b2"][0])

    inputs = (A_norm.astype(bf), feat, w_hall, w_iall, w_mlp, b_pack)

    # Single invocation (no grid): whole arrays live in VMEM, no pipeline overhead.
    return pl.pallas_call(
        functools.partial(mpnn_kernel, n_layers=n_layers, n_nodes=N,
                          in_feats=F, hid_feats=H, out_feats=out_feats),
        out_shape=jax.ShapeDtypeStruct((1, out_feats), jnp.float32),
        in_specs=[pl.BlockSpec(memory_space=pltpu.MemorySpace.VMEM) for _ in inputs],
        out_specs=pl.BlockSpec(memory_space=pltpu.MemorySpace.VMEM),
    )(*inputs)
    # TODO(synk): for batched graphs add a leading 'parallel' grid axis (uses v7x's 2nd
    # TensorCore; the single-graph ones-row readout must become a per-graph segment sum),
    # and for realistic N row-tile A_norm/h over dst nodes with bf16 A and a tile sized
    # against 64 MiB VMEM on v7x (128 MiB on v5e/v6e), raising vmem_limit_bytes explicitly.


def mpnn_reference(A_norm, feat, p, n_layers):
    h = feat
    for _ in range(n_layers):
        m = jax.nn.relu(A_norm @ (h @ p["wgc"]) + p["bgc"])
        r = jax.nn.sigmoid(m @ p["wir"] + h @ p["whr"] + p["br"])
        z = jax.nn.sigmoid(m @ p["wiz"] + h @ p["whz"] + p["bz"])
        n = jnp.tanh(m @ p["win"] + p["bin"] + r * (h @ p["whn"] + p["bhn"]))
        h = (1.0 - z) * n + z * h

    def mlp(x):
        return jax.nn.relu(x @ p["w1"] + p["b1"]) @ p["w2"] + p["b2"]

    return jnp.sum(mlp(feat) + mlp(h), axis=0, keepdims=True)


if __name__ == "__main__":
    N = 8              # number of nodes (single graph)
    in_feats = 32
    hid_feats = 32
    out_feats = 32
    n_layers = 3

    key = jax.random.PRNGKey(0)
    ks = jax.random.split(key, 16)

    # Synthetic graph: random directed edges + self loops (avoids zero degrees).
    adj = (jax.random.uniform(ks[0], (N, N)) < 0.4).astype(jnp.float32)
    adj = jnp.minimum(adj + jnp.eye(N, dtype=jnp.float32), 1.0)              # A[src, dst]
    deg_out = jnp.sum(adj, axis=1)
    deg_in = jnp.sum(adj, axis=0)
    A_norm = (deg_in ** -0.5)[:, None] * adj.T * (deg_out ** -0.5)[None, :]  # [dst, src]
    A_norm = A_norm.astype(jnp.float32)

    feat = jax.random.normal(ks[1], (N, in_feats), dtype=jnp.float32)

    s = 0.1  # deterministic small-scale init
    params = {
        # GraphConv(in_feats -> hid_feats, weight=True, bias=True)
        "wgc": s * jax.random.normal(ks[2], (in_feats, hid_feats), jnp.float32),
        "bgc": s * jax.random.normal(ks[3], (1, hid_feats), jnp.float32),
        # GRU(input=hid_feats, hidden=in_feats): input/hidden weights per gate (transposed)
        "wir": s * jax.random.normal(ks[4], (hid_feats, in_feats), jnp.float32),
        "wiz": s * jax.random.normal(ks[5], (hid_feats, in_feats), jnp.float32),
        "win": s * jax.random.normal(ks[6], (hid_feats, in_feats), jnp.float32),
        "whr": s * jax.random.normal(ks[7], (in_feats, in_feats), jnp.float32),
        "whz": s * jax.random.normal(ks[8], (in_feats, in_feats), jnp.float32),
        "whn": s * jax.random.normal(ks[9], (in_feats, in_feats), jnp.float32),
        "br":  s * jax.random.normal(ks[10], (1, in_feats), jnp.float32),  # b_ir + b_hr
        "bz":  s * jax.random.normal(ks[11], (1, in_feats), jnp.float32),  # b_iz + b_hz
        "bin": s * jax.random.normal(ks[12], (1, in_feats), jnp.float32),  # b_in
        "bhn": s * jax.random.normal(ks[13], (1, in_feats), jnp.float32),  # b_hn
        # MLP: Linear(in, out) -> ReLU -> Linear(out, out)
        "w1": s * jax.random.normal(ks[14], (in_feats, out_feats), jnp.float32),
        "b1": jnp.zeros((1, out_feats), jnp.float32),
        "w2": s * jax.random.normal(ks[15], (out_feats, out_feats), jnp.float32),
        "b2": jnp.zeros((1, out_feats), jnp.float32),
    }

    out = mpnn_forward(A_norm, feat, params, n_layers)
    out = jax.block_until_ready(out)

    ref = mpnn_reference(A_norm, feat, params, n_layers)
    assert out.shape == (1, out_feats)
    # Tolerance covers bf16 MXU operands (f32 accumulation) vs. the plain-f32 jnp reference;
    # structural bugs in the packed/fused gate math would show up as O(0.1+) errors.
    assert jnp.allclose(out, ref, rtol=5e-2, atol=5e-2), (out, ref)

    print("KERNEL_OK")
</pallas_src>

<mosaic_0001>
module attributes {stable_mosaic.version = 11 : i64} {
  func.func @mpnn_kernel(%arg0: memref<8x8xbf16, #tpu.memory_space<vmem>>, %arg1: memref<8x32xf32, #tpu.memory_space<vmem>>, %arg2: memref<32x128xbf16, #tpu.memory_space<vmem>>, %arg3: memref<32x128xbf16, #tpu.memory_space<vmem>>, %arg4: memref<2x32x32xbf16, #tpu.memory_space<vmem>>, %arg5: memref<8x128xf32, #tpu.memory_space<vmem>>, %arg6: memref<1x32xf32, #tpu.memory_space<vmem>>) attributes {dimension_semantics = [], scalar_prefetch = 0 : i64, scratch_operands = 0 : i64, tpu.core_type = #tpu.core_type<tc>} {
    %c0 = arith.constant 0 : index
    %c0_0 = arith.constant 0 : index
    %0 = vector.load %arg0[%c0, %c0_0] : memref<8x8xbf16, #tpu.memory_space<vmem>>, vector<8x8xbf16>
    %c0_1 = arith.constant 0 : index
    %c0_2 = arith.constant 0 : index
    %1 = vector.load %arg1[%c0_1, %c0_2] : memref<8x32xf32, #tpu.memory_space<vmem>>, vector<8x32xf32>
    %c0_3 = arith.constant 0 : index
    %c0_4 = arith.constant 0 : index
    %2 = vector.load %arg2[%c0_3, %c0_4] : memref<32x128xbf16, #tpu.memory_space<vmem>>, vector<32x128xbf16>
    %c0_5 = arith.constant 0 : index
    %c0_6 = arith.constant 0 : index
    %3 = vector.load %arg3[%c0_5, %c0_6] : memref<32x128xbf16, #tpu.memory_space<vmem>>, vector<32x128xbf16>
    %c0_7 = arith.constant 0 : index
    %c0_8 = arith.constant 0 : index
    %4 = vector.load %arg5[%c0_7, %c0_8] : memref<8x128xf32, #tpu.memory_space<vmem>>, vector<8x128xf32>
    %5 = vector.extract_strided_slice %4 {offsets = [0, 0], sizes = [1, 32], strides = [1, 1]} : vector<8x128xf32> to vector<1x32xf32>
    %6 = vector.shape_cast %5 : vector<1x32xf32> to vector<1x32xf32>
    %7 = vector.broadcast %6 : vector<1x32xf32> to vector<8x32xf32>
    %8 = vector.extract_strided_slice %4 {offsets = [1, 0], sizes = [1, 128], strides = [1, 1]} : vector<8x128xf32> to vector<1x128xf32>
    %9 = vector.shape_cast %8 : vector<1x128xf32> to vector<1x128xf32>
    %10 = vector.broadcast %9 : vector<1x128xf32> to vector<8x128xf32>
    %11 = vector.extract_strided_slice %4 {offsets = [2, 0], sizes = [1, 32], strides = [1, 1]} : vector<8x128xf32> to vector<1x32xf32>
    %12 = vector.shape_cast %11 : vector<1x32xf32> to vector<1x32xf32>
    %13 = vector.broadcast %12 : vector<1x32xf32> to vector<8x32xf32>
    %14 = arith.truncf %1 : vector<8x32xf32> to vector<8x32xbf16>
    %cst = arith.constant dense<0.000000e+00> : vector<8x128xf32>
    %15 = tpu.matmul %14, %2, %cst {dimension_numbers = #tpu.dot_dimension_numbers<[1], [0], [0], [1], [0, 0, 1, 1], [], []>} : vector<8x32xbf16>, vector<32x128xbf16>, vector<8x128xf32> -> vector<8x128xf32>
    %16 = vector.extract_strided_slice %15 {offsets = [0, 0], sizes = [8, 32], strides = [1, 1]} : vector<8x128xf32> to vector<8x32xf32>
    %17 = arith.truncf %16 : vector<8x32xf32> to vector<8x32xbf16>
    %cst_9 = arith.constant dense<0.000000e+00> : vector<8x32xf32>
    %18 = tpu.matmul %0, %17, %cst_9 {dimension_numbers = #tpu.dot_dimension_numbers<[1], [0], [0], [1], [0, 0, 1, 1], [], []>} : vector<8x8xbf16>, vector<8x32xbf16>, vector<8x32xf32> -> vector<8x32xf32>
    %19 = arith.addf %18, %7 : vector<8x32xf32>
    %cst_10 = arith.constant 0.000000e+00 : f32
    %20 = vector.broadcast %cst_10 : f32 to vector<8x32xf32>
    %21 = arith.maximumf %19, %20 : vector<8x32xf32>
    %22 = arith.truncf %21 : vector<8x32xf32> to vector<8x32xbf16>
    %cst_11 = arith.constant dense<0.000000e+00> : vector<8x128xf32>
    %23 = tpu.matmul %22, %3, %cst_11 {dimension_numbers = #tpu.dot_dimension_numbers<[1], [0], [0], [1], [0, 0, 1, 1], [], []>} : vector<8x32xbf16>, vector<32x128xbf16>, vector<8x128xf32> -> vector<8x128xf32>
    %24 = arith.addf %23, %10 : vector<8x128xf32>
    %25 = arith.addf %24, %15 : vector<8x128xf32>
    %26 = vector.extract_strided_slice %25 {offsets = [0, 32], sizes = [8, 64], strides = [1, 1]} : vector<8x128xf32> to vector<8x64xf32>
    %27 = arith.negf %26 : vector<8x64xf32>
    %28 = math.exp %27 : vector<8x64xf32>
    %cst_12 = arith.constant 1.000000e+00 : f32
    %29 = vector.broadcast %cst_12 : f32 to vector<8x64xf32>
    %30 = arith.addf %29, %28 : vector<8x64xf32>
    %31 = arith.divf %29, %30 : vector<8x64xf32>
    %32 = vector.extract_strided_slice %31 {offsets = [0, 0], sizes = [8, 32], strides = [1, 1]} : vector<8x64xf32> to vector<8x32xf32>
    %33 = vector.extract_strided_slice %31 {offsets = [0, 32], sizes = [8, 32], strides = [1, 1]} : vector<8x64xf32> to vector<8x32xf32>
    %34 = vector.extract_strided_slice %24 {offsets = [0, 96], sizes = [8, 32], strides = [1, 1]} : vector<8x128xf32> to vector<8x32xf32>
    %35 = vector.extract_strided_slice %15 {offsets = [0, 96], sizes = [8, 32], strides = [1, 1]} : vector<8x128xf32> to vector<8x32xf32>
    %36 = arith.addf %35, %13 : vector<8x32xf32>
    %37 = arith.mulf %32, %36 : vector<8x32xf32>
    %38 = arith.addf %34, %37 : vector<8x32xf32>
    %39 = math.tanh %38 : vector<8x32xf32>
    %cst_13 = arith.constant 1.000000e+00 : f32
    %40 = vector.broadcast %cst_13 : f32 to vector<8x32xf32>
    %41 = arith.subf %40, %33 : vector<8x32xf32>
    %42 = arith.mulf %41, %39 : vector<8x32xf32>
    %43 = arith.mulf %33, %1 : vector<8x32xf32>
    %44 = arith.addf %42, %43 : vector<8x32xf32>
    %45 = arith.truncf %44 : vector<8x32xf32> to vector<8x32xbf16>
    %cst_14 = arith.constant dense<0.000000e+00> : vector<8x128xf32>
    %46 = tpu.matmul %45, %2, %cst_14 {dimension_numbers = #tpu.dot_dimension_numbers<[1], [0], [0], [1], [0, 0, 1, 1], [], []>} : vector<8x32xbf16>, vector<32x128xbf16>, vector<8x128xf32> -> vector<8x128xf32>
    %47 = vector.extract_strided_slice %46 {offsets = [0, 0], sizes = [8, 32], strides = [1, 1]} : vector<8x128xf32> to vector<8x32xf32>
    %48 = arith.truncf %47 : vector<8x32xf32> to vector<8x32xbf16>
    %cst_15 = arith.constant dense<0.000000e+00> : vector<8x32xf32>
    %49 = tpu.matmul %0, %48, %cst_15 {dimension_numbers = #tpu.dot_dimension_numbers<[1], [0], [0], [1], [0, 0, 1, 1], [], []>} : vector<8x8xbf16>, vector<8x32xbf16>, vector<8x32xf32> -> vector<8x32xf32>
    %50 = arith.addf %49, %7 : vector<8x32xf32>
    %cst_16 = arith.constant 0.000000e+00 : f32
    %51 = vector.broadcast %cst_16 : f32 to vector<8x32xf32>
    %52 = arith.maximumf %50, %51 : vector<8x32xf32>
    %53 = arith.truncf %52 : vector<8x32xf32> to vector<8x32xbf16>
    %cst_17 = arith.constant dense<0.000000e+00> : vector<8x128xf32>
    %54 = tpu.matmul %53, %3, %cst_17 {dimension_numbers = #tpu.dot_dimension_numbers<[1], [0], [0], [1], [0, 0, 1, 1], [], []>} : vector<8x32xbf16>, vector<32x128xbf16>, vector<8x128xf32> -> vector<8x128xf32>
    %55 = arith.addf %54, %10 : vector<8x128xf32>
    %56 = arith.addf %55, %46 : vector<8x128xf32>
    %57 = vector.extract_strided_slice %56 {offsets = [0, 32], sizes = [8, 64], strides = [1, 1]} : vector<8x128xf32> to vector<8x64xf32>
    %58 = arith.negf %57 : vector<8x64xf32>
    %59 = math.exp %58 : vector<8x64xf32>
    %cst_18 = arith.constant 1.000000e+00 : f32
    %60 = vector.broadcast %cst_18 : f32 to vector<8x64xf32>
    %61 = arith.addf %60, %59 : vector<8x64xf32>
    %62 = arith.divf %60, %61 : vector<8x64xf32>
    %63 = vector.extract_strided_slice %62 {offsets = [0, 0], sizes = [8, 32], strides = [1, 1]} : vector<8x64xf32> to vector<8x32xf32>
    %64 = vector.extract_strided_slice %62 {offsets = [0, 32], sizes = [8, 32], strides = [1, 1]} : vector<8x64xf32> to vector<8x32xf32>
    %65 = vector.extract_strided_slice %55 {offsets = [0, 96], sizes = [8, 32], strides = [1, 1]} : vector<8x128xf32> to vector<8x32xf32>
    %66 = vector.extract_strided_slice %46 {offsets = [0, 96], sizes = [8, 32], strides = [1, 1]} : vector<8x128xf32> to vector<8x32xf32>
    %67 = arith.addf %66, %13 : vector<8x32xf32>
    %68 = arith.mulf %63, %67 : vector<8x32xf32>
    %69 = arith.addf %65, %68 : vector<8x32xf32>
    %70 = math.tanh %69 : vector<8x32xf32>
    %cst_19 = arith.constant 1.000000e+00 : f32
    %71 = vector.broadcast %cst_19 : f32 to vector<8x32xf32>
    %72 = arith.subf %71, %64 : vector<8x32xf32>
    %73 = arith.mulf %72, %70 : vector<8x32xf32>
    %74 = arith.mulf %64, %44 : vector<8x32xf32>
    %75 = arith.addf %73, %74 : vector<8x32xf32>
    %76 = arith.truncf %75 : vector<8x32xf32> to vector<8x32xbf16>
    %cst_20 = arith.constant dense<0.000000e+00> : vector<8x128xf32>
    %77 = tpu.matmul %76, %2, %cst_20 {dimension_numbers = #tpu.dot_dimension_numbers<[1], [0], [0], [1], [0, 0, 1, 1], [], []>} : vector<8x32xbf16>, vector<32x128xbf16>, vector<8x128xf32> -> vector<8x128xf32>
    %78 = vector.extract_strided_slice %77 {offsets = [0, 0], sizes = [8, 32], strides = [1, 1]} : vector<8x128xf32> to vector<8x32xf32>
    %79 = arith.truncf %78 : vector<8x32xf32> to vector<8x32xbf16>
    %cst_21 = arith.constant dense<0.000000e+00> : vector<8x32xf32>
    %80 = tpu.matmul %0, %79, %cst_21 {dimension_numbers = #tpu.dot_dimension_numbers<[1], [0], [0], [1], [0, 0, 1, 1], [], []>} : vector<8x8xbf16>, vector<8x32xbf16>, vector<8x32xf32> -> vector<8x32xf32>
    %81 = arith.addf %80, %7 : vector<8x32xf32>
    %cst_22 = arith.constant 0.000000e+00 : f32
    %82 = vector.broadcast %cst_22 : f32 to vector<8x32xf32>
    %83 = arith.maximumf %81, %82 : vector<8x32xf32>
    %84 = arith.truncf %83 : vector<8x32xf32> to vector<8x32xbf16>
    %cst_23 = arith.constant dense<0.000000e+00> : vector<8x128xf32>
    %85 = tpu.matmul %84, %3, %cst_23 {dimension_numbers = #tpu.dot_dimension_numbers<[1], [0], [0], [1], [0, 0, 1, 1], [], []>} : vector<8x32xbf16>, vector<32x128xbf16>, vector<8x128xf32> -> vector<8x128xf32>
    %86 = arith.addf %85, %10 : vector<8x128xf32>
    %87 = arith.addf %86, %77 : vector<8x128xf32>
    %88 = vector.extract_strided_slice %87 {offsets = [0, 32], sizes = [8, 64], strides = [1, 1]} : vector<8x128xf32> to vector<8x64xf32>
    %89 = arith.negf %88 : vector<8x64xf32>
    %90 = math.exp %89 : vector<8x64xf32>
    %cst_24 = arith.constant 1.000000e+00 : f32
    %91 = vector.broadcast %cst_24 : f32 to vector<8x64xf32>
    %92 = arith.addf %91, %90 : vector<8x64xf32>
    %93 = arith.divf %91, %92 : vector<8x64xf32>
    %94 = vector.extract_strided_slice %93 {offsets = [0, 0], sizes = [8, 32], strides = [1, 1]} : vector<8x64xf32> to vector<8x32xf32>
    %95 = vector.extract_strided_slice %93 {offsets = [0, 32], sizes = [8, 32], strides = [1, 1]} : vector<8x64xf32> to vector<8x32xf32>
    %96 = vector.extract_strided_slice %86 {offsets = [0, 96], sizes = [8, 32], strides = [1, 1]} : vector<8x128xf32> to vector<8x32xf32>
    %97 = vector.extract_strided_slice %77 {offsets = [0, 96], sizes = [8, 32], strides = [1, 1]} : vector<8x128xf32> to vector<8x32xf32>
    %98 = arith.addf %97, %13 : vector<8x32xf32>
    %99 = arith.mulf %94, %98 : vector<8x32xf32>
    %100 = arith.addf %96, %99 : vector<8x32xf32>
    %101 = math.tanh %100 : vector<8x32xf32>
    %cst_25 = arith.constant 1.000000e+00 : f32
    %102 = vector.broadcast %cst_25 : f32 to vector<8x32xf32>
    %103 = arith.subf %102, %95 : vector<8x32xf32>
    %104 = arith.mulf %103, %101 : vector<8x32xf32>
    %105 = arith.mulf %95, %75 : vector<8x32xf32>
    %106 = arith.addf %104, %105 : vector<8x32xf32>
    %c0_26 = arith.constant 0 : index
    %c0_27 = arith.constant 0 : index
    %c0_28 = arith.constant 0 : index
    %107 = vector.load %arg4[%c0_26, %c0_27, %c0_28] : memref<2x32x32xbf16, #tpu.memory_space<vmem>>, vector<1x32x32xbf16>
    %108 = vector.shape_cast %107 : vector<1x32x32xbf16> to vector<32x32xbf16>
    %c1 = arith.constant 1 : index
    %c0_29 = arith.constant 0 : index
    %c0_30 = arith.constant 0 : index
    %109 = vector.load %arg4[%c1, %c0_29, %c0_30] : memref<2x32x32xbf16, #tpu.memory_space<vmem>>, vector<1x32x32xbf16>
    %110 = vector.shape_cast %109 : vector<1x32x32xbf16> to vector<32x32xbf16>
    %111 = tpu.concatenate %1, %106 in 0 : vector<8x32xf32>, vector<8x32xf32> -> vector<16x32xf32>
    %112 = vector.extract_strided_slice %4 {offsets = [3, 0], sizes = [1, 32], strides = [1, 1]} : vector<8x128xf32> to vector<1x32xf32>
    %113 = vector.shape_cast %112 : vector<1x32xf32> to vector<1x32xf32>
    %114 = vector.broadcast %113 : vector<1x32xf32> to vector<16x32xf32>
    %115 = arith.truncf %111 : vector<16x32xf32> to vector<16x32xbf16>
    %cst_31 = arith.constant dense<0.000000e+00> : vector<16x32xf32>
    %116 = tpu.matmul %115, %108, %cst_31 {dimension_numbers = #tpu.dot_dimension_numbers<[1], [0], [0], [1], [0, 0, 1, 1], [], []>} : vector<16x32xbf16>, vector<32x32xbf16>, vector<16x32xf32> -> vector<16x32xf32>
    %117 = arith.addf %116, %114 : vector<16x32xf32>
    %cst_32 = arith.constant 0.000000e+00 : f32
    %118 = vector.broadcast %cst_32 : f32 to vector<16x32xf32>
    %119 = arith.maximumf %117, %118 : vector<16x32xf32>
    %cst_33 = arith.constant 1.000000e+00 : f32
    %120 = vector.broadcast %cst_33 : f32 to vector<1x16xf32>
    %121 = arith.truncf %120 : vector<1x16xf32> to vector<1x16xbf16>
    %122 = arith.truncf %119 : vector<16x32xf32> to vector<16x32xbf16>
    %cst_34 = arith.constant dense<0.000000e+00> : vector<1x32xf32>
    %123 = tpu.matmul %121, %122, %cst_34 {dimension_numbers = #tpu.dot_dimension_numbers<[1], [0], [0], [1], [0, 0, 1, 1], [], []>} : vector<1x16xbf16>, vector<16x32xbf16>, vector<1x32xf32> -> vector<1x32xf32>
    %124 = arith.truncf %123 : vector<1x32xf32> to vector<1x32xbf16>
    %cst_35 = arith.constant dense<0.000000e+00> : vector<1x32xf32>
    %125 = tpu.matmul %124, %110, %cst_35 {dimension_numbers = #tpu.dot_dimension_numbers<[1], [0], [0], [1], [0, 0, 1, 1], [], []>} : vector<1x32xbf16>, vector<32x32xbf16>, vector<1x32xf32> -> vector<1x32xf32>
    %126 = vector.extract_strided_slice %4 {offsets = [4, 0], sizes = [1, 32], strides = [1, 1]} : vector<8x128xf32> to vector<1x32xf32>
    %cst_36 = arith.constant 1.600000e+01 : f32
    %127 = vector.broadcast %cst_36 : f32 to vector<1x32xf32>
    %128 = arith.mulf %127, %126 : vector<1x32xf32>
    %129 = arith.addf %125, %128 : vector<1x32xf32>
    %c0_37 = arith.constant 0 : index
    %c0_38 = arith.constant 0 : index
    %130 = vector.load %arg6[%c0_37, %c0_38] : memref<1x32xf32, #tpu.memory_space<vmem>>, vector<1x32xf32>
    tpu.vector_store %arg6[%c0_37, %c0_38], %129 {strides = array<i32>} : memref<1x32xf32, #tpu.memory_space<vmem>>, vector<1x32xf32>,
    return
  }
}

</mosaic_0001>

<llo_original>
// kernel: tpu_custom_call.1
$region0: #{tpu_custom_call.1}
  #allocation0 [shape = 'u32[]', space=smem, size = 0x4, offset = 0x4, fixed_abs, tag = 'smem constant byte address 0x4 - core index']
  #allocation1 [shape = 'u32[144,128]{1,0:T(1,128)}', space=vmem, size = 0x12000, scoped, tag = 'internal scratch']
  %s0 = inlined_call_operand.hbm [shape: bf16[8,8], index: 0, kind: input, shape index: {}]
  %s1 = inlined_call_operand.hbm [shape: f32[8,32], index: 1, kind: input, shape index: {}]
  %s2 = inlined_call_operand.hbm [shape: bf16[32,128], index: 2, kind: input, shape index: {}]
  %s3 = inlined_call_operand.hbm [shape: bf16[32,128], index: 3, kind: input, shape index: {}]
  %s4 = inlined_call_operand.hbm [shape: bf16[2,32,32], index: 4, kind: input, shape index: {}]
  %s5 = inlined_call_operand.vmem [shape: f32[8,128], index: 5, kind: input, shape index: {}]
  %s6 = inlined_call_operand.hbm [shape: f32[1,32], index: 6, kind: output, shape index: {}]
  %s7 = sld [smem:[#allocation0]]
  $region54: #{tpu_custom_call.1} parent=0
    _
  %s9 = ssub.s32 1, %s7
  %s10 = scalar_select 0, %s9, %s7
  $region1: #{tpu_custom_call.1} parent=0
    #allocation2 [shape = 'u8[2048]{0}', space=vmem, size = 0x800, scoped, tag = 'input window, operand 0, single buffered']
    #allocation3 [shape = 's32[1]{0}', space=sflag, size = 0x4, scoped, tag = 'scoped memory for tpu_custom_call.1']
    #allocation4 [shape = 's32[1]{0}', space=sflag, size = 0x4, scoped, tag = 'scoped memory for tpu_custom_call.1']
    #allocation5 [shape = 'u8[4096]{0}', space=vmem, size = 0x1000, scoped, tag = 'input window, operand 1, single buffered']
    #allocation6 [shape = 's32[1]{0}', space=sflag, size = 0x4, scoped, tag = 'scoped memory for tpu_custom_call.1']
    #allocation7 [shape = 'u8[8192]{0}', space=vmem, size = 0x2000, scoped, tag = 'input window, operand 2, single buffered']
    #allocation8 [shape = 'u8[8192]{0}', space=vmem, size = 0x2000, scoped, tag = 'input window, operand 3, single buffered']
    #allocation9 [shape = 's32[1]{0}', space=sflag, size = 0x4, scoped, tag = 'scoped memory for tpu_custom_call.1']
    #allocation10 [shape = 'u8[16384]{0}', space=vmem, size = 0x4000, scoped, tag = 'input window, operand 4, single buffered']
    #allocation11 [shape = 'u8[512]{0}', space=vmem, size = 0x400, scoped, tag = 'output window, operand 0, single buffered']
    %11 = vsyncpa [#allocation3], 0
    %12 = vsyncpa [#allocation6], 0
    %13 = vsyncpa [#allocation9], 0
    %14 = vsyncpa [#allocation4], 0
    // Predicated region
    $region2: #{tpu_custom_call.1} parent=1 // pred_check
      _
    $region3: #{tpu_custom_call.1} parent=1 // pred_check_branch
      %16 = sbr.rel (0) target = $region5
    $region4: #{tpu_custom_call.1} parent=1 // pred_region
      %s18 = ssub.s32 64, 64
      %19 = vsyncadd [#allocation3], %s18
      %s21 = sshll.u32 [#allocation2], 4
      %s22 = int_to_ptr.vmem [resolvable:$true] %s21
      %24 = dma.hbm_to_vmem [thread:$0]  %s0, 64, %s22, [#allocation3]
    $region5: #{tpu_custom_call.1} parent=1 // pred_fallthru
      _
    // Predicated region
    $region6: #{tpu_custom_call.1} parent=1 // pred_check
      _
    $region7: #{tpu_custom_call.1} parent=1 // pred_check_branch
      %26 = sbr.rel (0) target = $region9
    $region8: #{tpu_custom_call.1} parent=1 // pred_region
      %s28 = ssub.s32 128, 128
      %29 = vsyncadd [#allocation6], %s28
      %s31 = sshll.u32 [#allocation5], 4
      %s32 = int_to_ptr.vmem [resolvable:$true] %s31
      %34 = dma.hbm_to_vmem [thread:$0]  %s1, 128, %s32, [#allocation6]
    $region9: #{tpu_custom_call.1} parent=1 // pred_fallthru
      _
    // Predicated region
    $region10: #{tpu_custom_call.1} parent=1 // pred_check
      _
    $region11: #{tpu_custom_call.1} parent=1 // pred_check_branch
      %36 = sbr.rel (0) target = $region13
    $region12: #{tpu_custom_call.1} parent=1 // pred_region
      %s38 = ssub.s32 256, 256
      %39 = vsyncadd [#allocation6], %s38
      %s40 = sshll.u32 [#allocation7], 4
      %s41 = int_to_ptr.vmem [resolvable:$true] %s40
      %46 = dma.hbm_to_vmem [thread:$0]  %s2, 256, %s41, [#allocation6], 64, 64, 4
    $region13: #{tpu_custom_call.1} parent=1 // pred_fallthru
      _
    // Predicated region
    $region14: #{tpu_custom_call.1} parent=1 // pred_check
      _
    $region15: #{tpu_custom_call.1} parent=1 // pred_check_branch
      %48 = sbr.rel (0) target = $region17
    $region16: #{tpu_custom_call.1} parent=1 // pred_region
      %s50 = ssub.s32 256, 256
      %51 = vsyncadd [#allocation9], %s50
      %s52 = sshll.u32 [#allocation8], 4
      %s53 = int_to_ptr.vmem [resolvable:$true] %s52
      %58 = dma.hbm_to_vmem [thread:$0]  %s3, 256, %s53, [#allocation9], 64, 64, 4
    $region17: #{tpu_custom_call.1} parent=1 // pred_fallthru
      _
    // Predicated region
    $region18: #{tpu_custom_call.1} parent=1 // pred_check
      _
    $region19: #{tpu_custom_call.1} parent=1 // pred_check_branch
      %60 = sbr.rel (0) target = $region21
    $region20: #{tpu_custom_call.1} parent=1 // pred_region
      %s62 = ssub.s32 512, 512
      %63 = vsyncadd [#allocation9], %s62
      %s64 = sshll.u32 [#allocation10], 4
      %s65 = int_to_ptr.vmem [resolvable:$true] %s64
      %70 = dma.hbm_to_vmem [thread:$0]  %s4, 512, %s65, [#allocation9], 64, 64, 4
    $region21: #{tpu_custom_call.1} parent=1 // pred_fallthru
      _
    // Predicated region
    $region22: #{tpu_custom_call.1} parent=1 // pred_check
      _
    $region23: #{tpu_custom_call.1} parent=1 // pred_check_branch
      %72 = sbr.rel (0) target = $region25
    $region24: #{tpu_custom_call.1} parent=1 // pred_region
      _
    $region25: #{tpu_custom_call.1} parent=1 // pred_fallthru
      _
    // Predicated region
    $region26: #{tpu_custom_call.1} parent=1 // pred_check
      _
    $region27: #{tpu_custom_call.1} parent=1 // pred_check_branch
      %74 = sbr.rel (0) target = $region29
    $region28: #{tpu_custom_call.1} parent=1 // pred_region
      %75 = dma.done [#allocation3], 64
    $region29: #{tpu_custom_call.1} parent=1 // pred_fallthru
      _
    // Predicated region
    $region30: #{tpu_custom_call.1} parent=1 // pred_check
      _
    $region31: #{tpu_custom_call.1} parent=1 // pred_check_branch
      %77 = sbr.rel (0) target = $region33
    $region32: #{tpu_custom_call.1} parent=1 // pred_region
      %78 = dma.done [#allocation6], 128
    $region33: #{tpu_custom_call.1} parent=1 // pred_fallthru
      _
    // Predicated region
    $region34: #{tpu_custom_call.1} parent=1 // pred_check
      _
    $region35: #{tpu_custom_call.1} parent=1 // pred_check_branch
      %80 = sbr.rel (0) target = $region37
    $region36: #{tpu_custom_call.1} parent=1 // pred_region
      %81 = dma.done [#allocation6], 256
    $region37: #{tpu_custom_call.1} parent=1 // pred_fallthru
      _
    // Predicated region
    $region38: #{tpu_custom_call.1} parent=1 // pred_check
      _
    $region39: #{tpu_custom_call.1} parent=1 // pred_check_branch
      %83 = sbr.rel (0) target = $region41
    $region40: #{tpu_custom_call.1} parent=1 // pred_region
      %84 = dma.done [#allocation9], 256
    $region41: #{tpu_custom_call.1} parent=1 // pred_fallthru
      _
    // Predicated region
    $region42: #{tpu_custom_call.1} parent=1 // pred_check
      _
    $region43: #{tpu_custom_call.1} parent=1 // pred_check_branch
      %86 = sbr.rel (0) target = $region45
    $region44: #{tpu_custom_call.1} parent=1 // pred_region
      %87 = dma.done [#allocation9], 512
    $region45: #{tpu_custom_call.1} parent=1 // pred_fallthru
      _
    %v90 = vld [vmem:[#allocation2] sm:$0xf]
    %v91 = vld [vmem:[#allocation5] sm:$0xff]
    %v92 = vld [vmem:[#allocation7] sm:$0xf]
    %v93 = vld [vmem:[#allocation7 + $0x4] sm:$0xf]
    %v94 = vld [vmem:[#allocation7 + $0x8] sm:$0xf]
    %v95 = vld [vmem:[#allocation7 + $0xc] sm:$0xf]
    %v96 = vld [vmem:[#allocation8] sm:$0xf]
    %v97 = vld [vmem:[#allocation8 + $0x4] sm:$0xf]
    %v98 = vld [vmem:[#allocation8 + $0x8] sm:$0xf]
    %v99 = vld [vmem:[#allocation8 + $0xc] sm:$0xf]
    %v100 = vld [vmem:[%s5] sm:$0xff]
    %v101 = vlaneseq
    %v102 = vshrl.u32 %v101, 7
    %v103 = vsub.s32 0, %v102
    %v104 = vrot.slane %v100, %v103
    %v105 = vlaneseq
    %v106 = vshrl.u32 %v105, 7
    %v107 = vsub.s32 1, %v106
    %v108 = vrot.slane %v100, %v107
    %v109 = vlaneseq
    %v110 = vshrl.u32 %v109, 7
    %v111 = vsub.s32 2, %v110
    %v112 = vrot.slane %v100, %v111
    %v113 = vpack.c.bf16 %v91, %v91
    %v118 = vunpack.c.l.b16 %v92
    %v119 = vunpack.c.l.b16 %v93
    %v120 = vunpack.c.l.b16 %v94
    %v121 = vunpack.c.l.b16 %v95
    %v122 = vpack.c.b16 %v119, %v118
    %v123 = vpack.c.b16 %v121, %v120
    %vm126 = vcmask 261120
    %v128 = vsel %vm126, %v113, 0
    %130 = vmatprep.subr.bf16.mxu0 0
    %131 = vmatpush1.bf16.msra.mxu0 0
    %132 = vmatprep.subr.bf16.mxu0 0
    %133 = vmatpush1.bf16.msra.mxu0 0
    %134 = vmatprep.subr.bf16.mxu0 0
    %135 = vmatpush1.bf16.msra.mxu0 0
    %136 = vmatprep.subr.bf16.mxu0 0
    %137 = vmatpush1.bf16.msra.mxu0 0
    %138 = vmatprep.subr.bf16.mxu0 0
    %139 = vmatpush1.bf16.msra.mxu0 0
    %140 = vmatprep.subr.bf16.mxu0 0
    %141 = vmatpush1.bf16.msra.mxu0 0
    %142 = vmatprep.subr.bf16.mxu0 0
    %143 = vmatpush1.bf16.msra.mxu0 %v123
    %144 = vmatprep.subr.bf16.mxu0 0
    %145 = vmatpush1.bf16.msra.mxu0 %v122
    %146 = vmatprep.subr.bf16.mxu0 0
    %147 = vmatpush2.bf16.msra.mxu0 0
    %148 = vmatprep.subr.bf16.mxu0 0
    %149 = vmatpush2.bf16.msra.mxu0 0
    %150 = vmatprep.subr.bf16.mxu0 0
    %151 = vmatpush2.bf16.msra.mxu0 0
    %152 = vmatprep.subr.bf16.mxu0 0
    %153 = vmatpush2.bf16.msra.mxu0 0
    %154 = vmatprep.subr.bf16.mxu0 0
    %155 = vmatpush2.bf16.msra.mxu0 0
    %156 = vmatprep.subr.bf16.mxu0 0
    %157 = vmatpush2.bf16.msra.mxu0 0
    %158 = vmatprep.subr.bf16.mxu0 0
    %159 = vmatpush2.bf16.msra.mxu0 0
    %160 = vmatprep.subr.bf16.mxu0 0
    %161 = vmatpush2.bf16.msra.mxu0 0
    %162 = vmatprep.mubr.bf16.mxu0 0
    %163 = vmatmul.mubr.bf16.gmra.mxu0 %v128
    %v164 = vpop.f32.mrf.mxu0
    %v165 = vadd.f32 0.0, %v164
    %v166 = vpop.f32.mrf.mxu0
    %v167 = vpop.f32.mrf.mxu0
    %v168 = vpop.f32.mrf.mxu0
    %169 = vdwg.mxu0
    %v170 = vpack.c.bf16 %v165, %v165
    %vm171 = vcmask 64512
    %v173 = vsel %vm171, %v90, 0
    %vm175 = vcmask 1043456
    %v177 = vsel %vm175, %v170, 0
    %179 = vmatprep.subr.bf16.mxu0 0
    %180 = vmatpush1.bf16.msra.mxu0 0
    %181 = vmatprep.subr.bf16.mxu0 0
    %182 = vmatpush1.bf16.msra.mxu0 0
    %183 = vmatprep.subr.bf16.mxu0 0
    %184 = vmatpush1.bf16.msra.mxu0 0
    %185 = vmatprep.subr.bf16.mxu0 0
    %186 = vmatpush1.bf16.msra.mxu0 0
    %187 = vmatprep.subr.bf16.mxu0 0
    %188 = vmatpush1.bf16.msra.mxu0 0
    %189 = vmatprep.subr.bf16.mxu0 0
    %190 = vmatpush1.bf16.msra.mxu0 0
    %191 = vmatprep.subr.bf16.mxu0 0
    %192 = vmatpush1.bf16.msra.mxu0 0
    %193 = vmatprep.subr.bf16.mxu0 0
    %194 = vmatpush1.bf16.msra.mxu0 %v177
    %195 = vmatprep.subr.bf16.mxu0 0
    %196 = vmatpush2.bf16.msra.mxu0 0
    %197 = vmatprep.subr.bf16.mxu0 0
    %198 = vmatpush2.bf16.msra.mxu0 0
    %199 = vmatprep.subr.bf16.mxu0 0
    %200 = vmatpush2.bf16.msra.mxu0 0
    %201 = vmatprep.subr.bf16.mxu0 0
    %202 = vmatpush2.bf16.msra.mxu0 0
    %203 = vmatprep.subr.bf16.mxu0 0
    %204 = vmatpush2.bf16.msra.mxu0 0
    %205 = vmatprep.subr.bf16.mxu0 0
    %206 = vmatpush2.bf16.msra.mxu0 0
    %207 = vmatprep.subr.bf16.mxu0 0
    %208 = vmatpush2.bf16.msra.mxu0 0
    %209 = vmatprep.subr.bf16.mxu0 0
    %210 = vmatpush2.bf16.msra.mxu0 0
    %211 = vmatprep.mubr.bf16.mxu0 0
    %212 = vmatmul.mubr.bf16.gmra.mxu0 %v173
    %v213 = vpop.f32.mrf.mxu0
    %v214 = vadd.f32 %v104, %v213
    %v215 = vpop.f32.mrf.mxu0
    %v216 = vpop.f32.mrf.mxu0
    %v217 = vpop.f32.mrf.mxu0
    %218 = vdwg.mxu0
    %v219 = vmax.f32 %v214, 0.0
    %v220 = vpack.c.bf16 %v219, %v219
    %v225 = vunpack.c.l.b16 %v96
    %v226 = vunpack.c.l.b16 %v97
    %v227 = vunpack.c.l.b16 %v98
    %v228 = vunpack.c.l.b16 %v99
    %v229 = vpack.c.b16 %v226, %v225
    %v230 = vpack.c.b16 %v228, %v227
    %v234 = vsel %vm126, %v220, 0
    %236 = vmatprep.subr.bf16.mxu0 0
    %237 = vmatpush1.bf16.msra.mxu0 0
    %238 = vmatprep.subr.bf16.mxu0 0
    %239 = vmatpush1.bf16.msra.mxu0 0
    %240 = vmatprep.subr.bf16.mxu0 0
    %241 = vmatpush1.bf16.msra.mxu0 0
    %242 = vmatprep.subr.bf16.mxu0 0
    %243 = vmatpush1.bf16.msra.mxu0 0
    %244 = vmatprep.subr.bf16.mxu0 0
    %245 = vmatpush1.bf16.msra.mxu0 0
    %246 = vmatprep.subr.bf16.mxu0 0
    %247 = vmatpush1.bf16.msra.mxu0 0
    %248 = vmatprep.subr.bf16.mxu0 0
    %249 = vmatpush1.bf16.msra.mxu0 %v230
    %250 = vmatprep.subr.bf16.mxu0 0
    %251 = vmatpush1.bf16.msra.mxu0 %v229
    %252 = vmatprep.subr.bf16.mxu0 0
    %253 = vmatpush2.bf16.msra.mxu0 0
    %254 = vmatprep.subr.bf16.mxu0 0
    %255 = vmatpush2.bf16.msra.mxu0 0
    %256 = vmatprep.subr.bf16.mxu0 0
    %257 = vmatpush2.bf16.msra.mxu0 0
    %258 = vmatprep.subr.bf16.mxu0 0
    %259 = vmatpush2.bf16.msra.mxu0 0
    %260 = vmatprep.subr.bf16.mxu0 0
    %261 = vmatpush2.bf16.msra.mxu0 0
    %262 = vmatprep.subr.bf16.mxu0 0
    %263 = vmatpush2.bf16.msra.mxu0 0
    %264 = vmatprep.subr.bf16.mxu0 0
    %265 = vmatpush2.bf16.msra.mxu0 0
    %266 = vmatprep.subr.bf16.mxu0 0
    %267 = vmatpush2.bf16.msra.mxu0 0
    %268 = vmatprep.mubr.bf16.mxu0 0
    %269 = vmatmul.mubr.bf16.gmra.mxu0 %v234
    %v270 = vpop.f32.mrf.mxu0
    %v271 = vadd.f32 %v108, %v270
    %v272 = vpop.f32.mrf.mxu0
    %v273 = vpop.f32.mrf.mxu0
    %v274 = vpop.f32.mrf.mxu0
    %275 = vdwg.mxu0
    %v276 = vadd.f32 %v271, %v165
    %v277 = vxor.u32 %v276, 2147483648
    %v278 = vmul.f32 %v277, 1.442695
    %v279 = vpow.pop %v278
    %v280 = vadd.f32 %v279, 1.0
    %v281 = vrcp.pop %v280
    %v282 = vmul.f32 1.0, %v281
    %284 = vrot.lane.b32.xlu0 %v112, 96
    %v285 = vpop.permute.xlu0 %284
    %v287 = vadd.f32 %v165, %v285
    %289 = vrot.lane.b32.xlu0 %v287, 64
    %v290 = vpop.permute.xlu0 %289
    %v292 = vmul.f32 %v282, %v290
    %294 = vrot.lane.b32.xlu0 %v292, 64
    %v295 = vpop.permute.xlu0 %294
    %v297 = vadd.f32 %v271, %v295
    %v298 = vtanh.pop %v297
    %v299 = vsub.f32 1.0, %v282
    %301 = vrot.lane.b32.xlu0 %v298, 96
    %v302 = vpop.permute.xlu0 %301
    %v304 = vmul.f32 %v299, %v302
    %306 = vrot.lane.b32.xlu0 %v91, 64
    %v307 = vpop.permute.xlu0 %306
    %v309 = vmul.f32 %v282, %v307
    %v310 = vadd.f32 %v304, %v309
    %v311 = vpack.c.bf16 %v310, %v310
    %313 = vrot.lane.b32.xlu0 %v311, 64
    %v314 = vpop.permute.xlu0 %313
    %v316 = vsel %vm126, %v314, 0
    %318 = vmatprep.subr.bf16.mxu0 0
    %319 = vmatpush1.bf16.msra.mxu0 0
    %320 = vmatprep.subr.bf16.mxu0 0
    %321 = vmatpush1.bf16.msra.mxu0 0
    %322 = vmatprep.subr.bf16.mxu0 0
    %323 = vmatpush1.bf16.msra.mxu0 0
    %324 = vmatprep.subr.bf16.mxu0 0
    %325 = vmatpush1.bf16.msra.mxu0 0
    %326 = vmatprep.subr.bf16.mxu0 0
    %327 = vmatpush1.bf16.msra.mxu0 0
    %328 = vmatprep.subr.bf16.mxu0 0
    %329 = vmatpush1.bf16.msra.mxu0 0
    %330 = vmatprep.subr.bf16.mxu0 0
    %331 = vmatpush1.bf16.msra.mxu0 %v123
    %332 = vmatprep.subr.bf16.mxu0 0
    %333 = vmatpush1.bf16.msra.mxu0 %v122
    %334 = vmatprep.subr.bf16.mxu0 0
    %335 = vmatpush2.bf16.msra.mxu0 0
    %336 = vmatprep.subr.bf16.mxu0 0
    %337 = vmatpush2.bf16.msra.mxu0 0
    %338 = vmatprep.subr.bf16.mxu0 0
    %339 = vmatpush2.bf16.msra.mxu0 0
    %340 = vmatprep.subr.bf16.mxu0 0
    %341 = vmatpush2.bf16.msra.mxu0 0
    %342 = vmatprep.subr.bf16.mxu0 0
    %343 = vmatpush2.bf16.msra.mxu0 0
    %344 = vmatprep.subr.bf16.mxu0 0
    %345 = vmatpush2.bf16.msra.mxu0 0
    %346 = vmatprep.subr.bf16.mxu0 0
    %347 = vmatpush2.bf16.msra.mxu0 0
    %348 = vmatprep.subr.bf16.mxu0 0
    %349 = vmatpush2.bf16.msra.mxu0 0
    %350 = vmatprep.mubr.bf16.mxu0 0
    %351 = vmatmul.mubr.bf16.gmra.mxu0 %v316
    %v352 = vpop.f32.mrf.mxu0
    %v353 = vadd.f32 0.0, %v352
    %v354 = vpop.f32.mrf.mxu0
    %v355 = vpop.f32.mrf.mxu0
    %v356 = vpop.f32.mrf.mxu0
    %357 = vdwg.mxu0
    %v358 = vpack.c.bf16 %v353, %v353
    %v360 = vsel %vm175, %v358, 0
    %362 = vmatprep.subr.bf16.mxu0 0
    %363 = vmatpush1.bf16.msra.mxu0 0
    %364 = vmatprep.subr.bf16.mxu0 0
    %365 = vmatpush1.bf16.msra.mxu0 0
    %366 = vmatprep.subr.bf16.mxu0 0
    %367 = vmatpush1.bf16.msra.mxu0 0
    %368 = vmatprep.subr.bf16.mxu0 0
    %369 = vmatpush1.bf16.msra.mxu0 0
    %370 = vmatprep.subr.bf16.mxu0 0
    %371 = vmatpush1.bf16.msra.mxu0 0
    %372 = vmatprep.subr.bf16.mxu0 0
    %373 = vmatpush1.bf16.msra.mxu0 0
    %374 = vmatprep.subr.bf16.mxu0 0
    %375 = vmatpush1.bf16.msra.mxu0 0
    %376 = vmatprep.subr.bf16.mxu0 0
    %377 = vmatpush1.bf16.msra.mxu0 %v360
    %378 = vmatprep.subr.bf16.mxu0 0
    %379 = vmatpush2.bf16.msra.mxu0 0
    %380 = vmatprep.subr.bf16.mxu0 0
    %381 = vmatpush2.bf16.msra.mxu0 0
    %382 = vmatprep.subr.bf16.mxu0 0
    %383 = vmatpush2.bf16.msra.mxu0 0
    %384 = vmatprep.subr.bf16.mxu0 0
    %385 = vmatpush2.bf16.msra.mxu0 0
    %386 = vmatprep.subr.bf16.mxu0 0
    %387 = vmatpush2.bf16.msra.mxu0 0
    %388 = vmatprep.subr.bf16.mxu0 0
    %389 = vmatpush2.bf16.msra.mxu0 0
    %390 = vmatprep.subr.bf16.mxu0 0
    %391 = vmatpush2.bf16.msra.mxu0 0
    %392 = vmatprep.subr.bf16.mxu0 0
    %393 = vmatpush2.bf16.msra.mxu0 0
    %394 = vmatprep.mubr.bf16.mxu0 0
    %395 = vmatmul.mubr.bf16.gmra.mxu0 %v173
    %v396 = vpop.f32.mrf.mxu0
    %v397 = vadd.f32 %v104, %v396
    %v398 = vpop.f32.mrf.mxu0
    %v399 = vpop.f32.mrf.mxu0
    %v400 = vpop.f32.mrf.mxu0
    %401 = vdwg.mxu0
    %v402 = vmax.f32 %v397, 0.0
    %v403 = vpack.c.bf16 %v402, %v402
    %v405 = vsel %vm126, %v403, 0
    %407 = vmatprep.subr.bf16.mxu0 0
    %408 = vmatpush1.bf16.msra.mxu0 0
    %409 = vmatprep.subr.bf16.mxu0 0
    %410 = vmatpush1.bf16.msra.mxu0 0
    %411 = vmatprep.subr.bf16.mxu0 0
    %412 = vmatpush1.bf16.msra.mxu0 0
    %413 = vmatprep.subr.bf16.mxu0 0
    %414 = vmatpush1.bf16.msra.mxu0 0
    %415 = vmatprep.subr.bf16.mxu0 0
    %416 = vmatpush1.bf16.msra.mxu0 0
    %417 = vmatprep.subr.bf16.mxu0 0
    %418 = vmatpush1.bf16.msra.mxu0 0
    %419 = vmatprep.subr.bf16.mxu0 0
    %420 = vmatpush1.bf16.msra.mxu0 %v230
    %421 = vmatprep.subr.bf16.mxu0 0
    %422 = vmatpush1.bf16.msra.mxu0 %v229
    %423 = vmatprep.subr.bf16.mxu0 0
    %424 = vmatpush2.bf16.msra.mxu0 0
    %425 = vmatprep.subr.bf16.mxu0 0
    %426 = vmatpush2.bf16.msra.mxu0 0
    %427 = vmatprep.subr.bf16.mxu0 0
    %428 = vmatpush2.bf16.msra.mxu0 0
    %429 = vmatprep.subr.bf16.mxu0 0
    %430 = vmatpush2.bf16.msra.mxu0 0
    %431 = vmatprep.subr.bf16.mxu0 0
    %432 = vmatpush2.bf16.msra.mxu0 0
    %433 = vmatprep.subr.bf16.mxu0 0
    %434 = vmatpush2.bf16.msra.mxu0 0
    %435 = vmatprep.subr.bf16.mxu0 0
    %436 = vmatpush2.bf16.msra.mxu0 0
    %437 = vmatprep.subr.bf16.mxu0 0
    %438 = vmatpush2.bf16.msra.mxu0 0
    %439 = vmatprep.mubr.bf16.mxu0 0
    %440 = vmatmul.mubr.bf16.gmra.mxu0 %v405
    %v441 = vpop.f32.mrf.mxu0
    %v442 = vadd.f32 %v108, %v441
    %v443 = vpop.f32.mrf.mxu0
    %v444 = vpop.f32.mrf.mxu0
    %v445 = vpop.f32.mrf.mxu0
    %446 = vdwg.mxu0
    %v447 = vadd.f32 %v442, %v353
    %v448 = vxor.u32 %v447, 2147483648
    %v449 = vmul.f32 %v448, 1.442695
    %v450 = vpow.pop %v449
    %v451 = vadd.f32 %v450, 1.0
    %v452 = vrcp.pop %v451
    %v453 = vmul.f32 1.0, %v452
    %v454 = vadd.f32 %v353, %v285
    %456 = vrot.lane.b32.xlu0 %v454, 64
    %v457 = vpop.permute.xlu0 %456
    %v459 = vmul.f32 %v453, %v457
    %461 = vrot.lane.b32.xlu0 %v459, 64
    %v462 = vpop.permute.xlu0 %461
    %v464 = vadd.f32 %v442, %v462
    %v465 = vtanh.pop %v464
    %v466 = vsub.f32 1.0, %v453
    %468 = vrot.lane.b32.xlu0 %v465, 96
    %v469 = vpop.permute.xlu0 %468
    %v471 = vmul.f32 %v466, %v469
    %v472 = vmul.f32 %v453, %v310
    %v473 = vadd.f32 %v471, %v472
    %v474 = vpack.c.bf16 %v473, %v473
    %476 = vrot.lane.b32.xlu0 %v474, 64
    %v477 = vpop.permute.xlu0 %476
    %v479 = vsel %vm126, %v477, 0
    %481 = vmatprep.subr.bf16.mxu0 0
    %482 = vmatpush1.bf16.msra.mxu0 0
    %483 = vmatprep.subr.bf16.mxu0 0
    %484 = vmatpush1.bf16.msra.mxu0 0
    %485 = vmatprep.subr.bf16.mxu0 0
    %486 = vmatpush1.bf16.msra.mxu0 0
    %487 = vmatprep.subr.bf16.mxu0 0
    %488 = vmatpush1.bf16.msra.mxu0 0
    %489 = vmatprep.subr.bf16.mxu0 0
    %490 = vmatpush1.bf16.msra.mxu0 0
    %491 = vmatprep.subr.bf16.mxu0 0
    %492 = vmatpush1.bf16.msra.mxu0 0
    %493 = vmatprep.subr.bf16.mxu0 0
    %494 = vmatpush1.bf16.msra.mxu0 %v123
    %495 = vmatprep.subr.bf16.mxu0 0
    %496 = vmatpush1.bf16.msra.mxu0 %v122
    %497 = vmatprep.subr.bf16.mxu0 0
    %498 = vmatpush2.bf16.msra.mxu0 0
    %499 = vmatprep.subr.bf16.mxu0 0
    %500 = vmatpush2.bf16.msra.mxu0 0
    %501 = vmatprep.subr.bf16.mxu0 0
    %502 = vmatpush2.bf16.msra.mxu0 0
    %503 = vmatprep.subr.bf16.mxu0 0
    %504 = vmatpush2.bf16.msra.mxu0 0
    %505 = vmatprep.subr.bf16.mxu0 0
    %506 = vmatpush2.bf16.msra.mxu0 0
    %507 = vmatprep.subr.bf16.mxu0 0
    %508 = vmatpush2.bf16.msra.mxu0 0
    %509 = vmatprep.subr.bf16.mxu0 0
    %510 = vmatpush2.bf16.msra.mxu0 0
    %511 = vmatprep.subr.bf16.mxu0 0
    %512 = vmatpush2.bf16.msra.mxu0 0
    %513 = vmatprep.mubr.bf16.mxu0 0
    %514 = vmatmul.mubr.bf16.gmra.mxu0 %v479
    %v515 = vpop.f32.mrf.mxu0
    %v516 = vadd.f32 0.0, %v515
    %v517 = vpop.f32.mrf.mxu0
    %v518 = vpop.f32.mrf.mxu0
    %v519 = vpop.f32.mrf.mxu0
    %520 = vdwg.mxu0
    %v521 = vpack.c.bf16 %v516, %v516
    %v523 = vsel %vm175, %v521, 0
    %525 = vmatprep.subr.bf16.mxu0 0
    %526 = vmatpush1.bf16.msra.mxu0 0
    %527 = vmatprep.subr.bf16.mxu0 0
    %528 = vmatpush1.bf16.msra.mxu0 0
    %529 = vmatprep.subr.bf16.mxu0 0
    %530 = vmatpush1.bf16.msra.mxu0 0
    %531 = vmatprep.subr.bf16.mxu0 0
    %532 = vmatpush1.bf16.msra.mxu0 0
    %533 = vmatprep.subr.bf16.mxu0 0
    %534 = vmatpush1.bf16.msra.mxu0 0
    %535 = vmatprep.subr.bf16.mxu0 0
    %536 = vmatpush1.bf16.msra.mxu0 0
    %537 = vmatprep.subr.bf16.mxu0 0
    %538 = vmatpush1.bf16.msra.mxu0 0
    %539 = vmatprep.subr.bf16.mxu0 0
    %540 = vmatpush1.bf16.msra.mxu0 %v523
    %541 = vmatprep.subr.bf16.mxu0 0
    %542 = vmatpush2.bf16.msra.mxu0 0
    %543 = vmatprep.subr.bf16.mxu0 0
    %544 = vmatpush2.bf16.msra.mxu0 0
    %545 = vmatprep.subr.bf16.mxu0 0
    %546 = vmatpush2.bf16.msra.mxu0 0
    %547 = vmatprep.subr.bf16.mxu0 0
    %548 = vmatpush2.bf16.msra.mxu0 0
    %549 = vmatprep.subr.bf16.mxu0 0
    %550 = vmatpush2.bf16.msra.mxu0 0
    %551 = vmatprep.subr.bf16.mxu0 0
    %552 = vmatpush2.bf16.msra.mxu0 0
    %553 = vmatprep.subr.bf16.mxu0 0
    %554 = vmatpush2.bf16.msra.mxu0 0
    %555 = vmatprep.subr.bf16.mxu0 0
    %556 = vmatpush2.bf16.msra.mxu0 0
    %557 = vmatprep.mubr.bf16.mxu0 0
    %558 = vmatmul.mubr.bf16.gmra.mxu0 %v173
    %v559 = vpop.f32.mrf.mxu0
    %v560 = vadd.f32 %v104, %v559
    %v561 = vpop.f32.mrf.mxu0
    %v562 = vpop.f32.mrf.mxu0
    %v563 = vpop.f32.mrf.mxu0
    %564 = vdwg.mxu0
    %v565 = vmax.f32 %v560, 0.0
    %v566 = vpack.c.bf16 %v565, %v565
    %v568 = vsel %vm126, %v566, 0
    %570 = vmatprep.subr.bf16.mxu0 0
    %571 = vmatpush1.bf16.msra.mxu0 0
    %572 = vmatprep.subr.bf16.mxu0 0
    %573 = vmatpush1.bf16.msra.mxu0 0
    %574 = vmatprep.subr.bf16.mxu0 0
    %575 = vmatpush1.bf16.msra.mxu0 0
    %576 = vmatprep.subr.bf16.mxu0 0
    %577 = vmatpush1.bf16.msra.mxu0 0
    %578 = vmatprep.subr.bf16.mxu0 0
    %579 = vmatpush1.bf16.msra.mxu0 0
    %580 = vmatprep.subr.bf16.mxu0 0
    %581 = vmatpush1.bf16.msra.mxu0 0
    %582 = vmatprep.subr.bf16.mxu0 0
    %583 = vmatpush1.bf16.msra.mxu0 %v230
    %584 = vmatprep.subr.bf16.mxu0 0
    %585 = vmatpush1.bf16.msra.mxu0 %v229
    %586 = vmatprep.subr.bf16.mxu0 0
    %587 = vmatpush2.bf16.msra.mxu0 0
    %588 = vmatprep.subr.bf16.mxu0 0
    %589 = vmatpush2.bf16.msra.mxu0 0
    %590 = vmatprep.subr.bf16.mxu0 0
    %591 = vmatpush2.bf16.msra.mxu0 0
    %592 = vmatprep.subr.bf16.mxu0 0
    %593 = vmatpush2.bf16.msra.mxu0 0
    %594 = vmatprep.subr.bf16.mxu0 0
    %595 = vmatpush2.bf16.msra.mxu0 0
    %596 = vmatprep.subr.bf16.mxu0 0
    %597 = vmatpush2.bf16.msra.mxu0 0
    %598 = vmatprep.subr.bf16.mxu0 0
    %599 = vmatpush2.bf16.msra.mxu0 0
    %600 = vmatprep.subr.bf16.mxu0 0
    %601 = vmatpush2.bf16.msra.mxu0 0
    %602 = vmatprep.mubr.bf16.mxu0 0
    %603 = vmatmul.mubr.bf16.gmra.mxu0 %v568
    %v604 = vpop.f32.mrf.mxu0
    %v605 = vadd.f32 %v108, %v604
    %v606 = vpop.f32.mrf.mxu0
    %v607 = vpop.f32.mrf.mxu0
    %v608 = vpop.f32.mrf.mxu0
    %609 = vdwg.mxu0
    %v610 = vadd.f32 %v605, %v516
    %v611 = vxor.u32 %v610, 2147483648
    %v612 = vmul.f32 %v611, 1.442695
    %v613 = vpow.pop %v612
    %v614 = vadd.f32 %v613, 1.0
    %v615 = vrcp.pop %v614
    %v616 = vmul.f32 1.0, %v615
    %v617 = vadd.f32 %v516, %v285
    %619 = vrot.lane.b32.xlu0 %v617, 64
    %v620 = vpop.permute.xlu0 %619
    %v622 = vmul.f32 %v616, %v620
    %624 = vrot.lane.b32.xlu0 %v622, 64
    %v625 = vpop.permute.xlu0 %624
    %v627 = vadd.f32 %v605, %v625
    %v628 = vtanh.pop %v627
    %v629 = vsub.f32 1.0, %v616
    %631 = vrot.lane.b32.xlu0 %v628, 96
    %v632 = vpop.permute.xlu0 %631
    %v634 = vmul.f32 %v629, %v632
    %v635 = vmul.f32 %v616, %v473
    %v636 = vadd.f32 %v634, %v635
    %v637 = vld [vmem:[#allocation10] sm:$0xf]
    %v638 = vld [vmem:[#allocation10 + $0x4] sm:$0xf]
    %v639 = vld [vmem:[#allocation10 + $0x8] sm:$0xf]
    %v640 = vld [vmem:[#allocation10 + $0xc] sm:$0xf]
    %s641 = scalar_lea.vmem [#allocation10], 16
    %v642 = vld [vmem:[%s641] sm:$0xf]
    %v643 = vld [vmem:[%s641 + $0x4] sm:$0xf]
    %v644 = vld [vmem:[%s641 + $0x8] sm:$0xf]
    %v645 = vld [vmem:[%s641 + $0xc] sm:$0xf]
    %647 = vrot.lane.b32.xlu0 %v636, 64
    %v648 = vpop.permute.xlu0 %647
    %v650 = vlaneseq
    %v651 = vshrl.u32 %v650, 7
    %v652 = vsub.s32 3, %v651
    %v653 = vrot.slane %v100, %v652
    %v654 = vpack.c.bf16 %v648, %v91
    %v659 = vunpack.c.l.b16 %v637
    %v660 = vunpack.c.l.b16 %v638
    %v661 = vunpack.c.l.b16 %v639
    %v662 = vunpack.c.l.b16 %v640
    %v663 = vpack.c.b16 %v660, %v659
    %v664 = vpack.c.b16 %v662, %v661
    %v668 = vsel %vm126, %v654, 0
    %670 = vmatprep.subr.bf16.mxu0 0
    %671 = vmatpush1.bf16.msra.mxu0 0
    %672 = vmatprep.subr.bf16.mxu0 0
    %673 = vmatpush1.bf16.msra.mxu0 0
    %674 = vmatprep.subr.bf16.mxu0 0
    %675 = vmatpush1.bf16.msra.mxu0 0
    %676 = vmatprep.subr.bf16.mxu0 0
    %677 = vmatpush1.bf16.msra.mxu0 0
    %678 = vmatprep.subr.bf16.mxu0 0
    %679 = vmatpush1.bf16.msra.mxu0 0
    %680 = vmatprep.subr.bf16.mxu0 0
    %681 = vmatpush1.bf16.msra.mxu0 0
    %682 = vmatprep.subr.bf16.mxu0 0
    %683 = vmatpush1.bf16.msra.mxu0 %v664
    %684 = vmatprep.subr.bf16.mxu0 0
    %685 = vmatpush1.bf16.msra.mxu0 %v663
    %686 = vmatprep.subr.bf16.mxu0 0
    %687 = vmatpush2.bf16.msra.mxu0 0
    %688 = vmatprep.subr.bf16.mxu0 0
    %689 = vmatpush2.bf16.msra.mxu0 0
    %690 = vmatprep.subr.bf16.mxu0 0
    %691 = vmatpush2.bf16.msra.mxu0 0
    %692 = vmatprep.subr.bf16.mxu0 0
    %693 = vmatpush2.bf16.msra.mxu0 0
    %694 = vmatprep.subr.bf16.mxu0 0
    %695 = vmatpush2.bf16.msra.mxu0 0
    %696 = vmatprep.subr.bf16.mxu0 0
    %697 = vmatpush2.bf16.msra.mxu0 0
    %698 = vmatprep.subr.bf16.mxu0 0
    %699 = vmatpush2.bf16.msra.mxu0 0
    %700 = vmatprep.subr.bf16.mxu0 0
    %701 = vmatpush2.bf16.msra.mxu0 0
    %702 = vmatprep.mubr.bf16.mxu0 0
    %703 = vmatmul.mubr.bf16.gmra.mxu0 %v668
    %v704 = vpop.f32.mrf.mxu0
    %v705 = vadd.f32 %v653, %v704
    %v706 = vpop.f32.mrf.mxu0
    %v707 = vpop.f32.mrf.mxu0
    %v708 = vadd.f32 %v653, %v707
    %v709 = vpop.f32.mrf.mxu0
    %710 = vdwg.mxu0
    %v711 = vmax.f32 %v705, 0.0
    %v712 = vmax.f32 %v708, 0.0
    %v713 = vpack.c.bf16 %v712, %v711
    %vm714 = vcmask 130048
    %v716 = vsel %vm714, 1065369472, 0
    %718 = vmatprep.subr.bf16.mxu0 0
    %719 = vmatpush1.bf16.msra.mxu0 0
    %720 = vmatprep.subr.bf16.mxu0 0
    %721 = vmatpush1.bf16.msra.mxu0 0
    %722 = vmatprep.subr.bf16.mxu0 0
    %723 = vmatpush1.bf16.msra.mxu0 0
    %724 = vmatprep.subr.bf16.mxu0 0
    %725 = vmatpush1.bf16.msra.mxu0 0
    %726 = vmatprep.subr.bf16.mxu0 0
    %727 = vmatpush1.bf16.msra.mxu0 0
    %728 = vmatprep.subr.bf16.mxu0 0
    %729 = vmatpush1.bf16.msra.mxu0 0
    %730 = vmatprep.subr.bf16.mxu0 0
    %731 = vmatpush1.bf16.msra.mxu0 0
    %732 = vmatprep.subr.bf16.mxu0 0
    %733 = vmatpush1.bf16.msra.mxu0 %v713
    %734 = vmatprep.subr.bf16.mxu0 0
    %735 = vmatpush2.bf16.msra.mxu0 0
    %736 = vmatprep.subr.bf16.mxu0 0
    %737 = vmatpush2.bf16.msra.mxu0 0
    %738 = vmatprep.subr.bf16.mxu0 0
    %739 = vmatpush2.bf16.msra.mxu0 0
    %740 = vmatprep.subr.bf16.mxu0 0
    %741 = vmatpush2.bf16.msra.mxu0 0
    %742 = vmatprep.subr.bf16.mxu0 0
    %743 = vmatpush2.bf16.msra.mxu0 0
    %744 = vmatprep.subr.bf16.mxu0 0
    %745 = vmatpush2.bf16.msra.mxu0 0
    %746 = vmatprep.subr.bf16.mxu0 0
    %747 = vmatpush2.bf16.msra.mxu0 0
    %748 = vmatprep.subr.bf16.mxu0 0
    %749 = vmatpush2.bf16.msra.mxu0 0
    %750 = vmatprep.mubr.bf16.mxu0 0
    %751 = vmatmul.mubr.bf16.gmra.mxu0 %v716
    %v752 = vpop.f32.mrf.mxu0
    %v753 = vadd.f32 0.0, %v752
    %v754 = vpop.f32.mrf.mxu0
    %v755 = vpop.f32.mrf.mxu0
    %v756 = vpop.f32.mrf.mxu0
    %757 = vdwg.mxu0
    %v758 = vpack.c.bf16 %v753, %v753
    %v759 = vmul.f32 %v100, 16.0
    %v764 = vunpack.c.l.b16 %v642
    %v765 = vunpack.c.l.b16 %v643
    %v766 = vunpack.c.l.b16 %v644
    %v767 = vunpack.c.l.b16 %v645
    %v768 = vpack.c.b16 %v765, %v764
    %v769 = vpack.c.b16 %v767, %v766
    %v773 = vrot.slane %v759, 4
    %v776 = vsel %vm126, %v758, 0
    %778 = vmatprep.subr.bf16.mxu0 0
    %779 = vmatpush1.bf16.msra.mxu0 0
    %780 = vmatprep.subr.bf16.mxu0 0
    %781 = vmatpush1.bf16.msra.mxu0 0
    %782 = vmatprep.subr.bf16.mxu0 0
    %783 = vmatpush1.bf16.msra.mxu0 0
    %784 = vmatprep.subr.bf16.mxu0 0
    %785 = vmatpush1.bf16.msra.mxu0 0
    %786 = vmatprep.subr.bf16.mxu0 0
    %787 = vmatpush1.bf16.msra.mxu0 0
    %788 = vmatprep.subr.bf16.mxu0 0
    %789 = vmatpush1.bf16.msra.mxu0 0
    %790 = vmatprep.subr.bf16.mxu0 0
    %791 = vmatpush1.bf16.msra.mxu0 %v769
    %792 = vmatprep.subr.bf16.mxu0 0
    %793 = vmatpush1.bf16.msra.mxu0 %v768
    %794 = vmatprep.subr.bf16.mxu0 0
    %795 = vmatpush2.bf16.msra.mxu0 0
    %796 = vmatprep.subr.bf16.mxu0 0
    %797 = vmatpush2.bf16.msra.mxu0 0
    %798 = vmatprep.subr.bf16.mxu0 0
    %799 = vmatpush2.bf16.msra.mxu0 0
    %800 = vmatprep.subr.bf16.mxu0 0
    %801 = vmatpush2.bf16.msra.mxu0 0
    %802 = vmatprep.subr.bf16.mxu0 0
    %803 = vmatpush2.bf16.msra.mxu0 0
    %804 = vmatprep.subr.bf16.mxu0 0
    %805 = vmatpush2.bf16.msra.mxu0 0
    %806 = vmatprep.subr.bf16.mxu0 0
    %807 = vmatpush2.bf16.msra.mxu0 0
    %808 = vmatprep.subr.bf16.mxu0 0
    %809 = vmatpush2.bf16.msra.mxu0 0
    %810 = vmatprep.mubr.bf16.mxu0 0
    %811 = vmatmul.mubr.bf16.gmra.mxu0 %v776
    %v812 = vpop.f32.mrf.mxu0
    %v813 = vadd.f32 %v773, %v812
    %v814 = vpop.f32.mrf.mxu0
    %v815 = vpop.f32.mrf.mxu0
    %v816 = vpop.f32.mrf.mxu0
    %817 = vdwg.mxu0
    %vm818 = vcmask 253952
    %819 = vst.msk [vmem:[#allocation11] sm:$0x1] %vm818, %v813
    // Predicated region
    $region46: #{tpu_custom_call.1} parent=1 // pred_check
      _
    $region47: #{tpu_custom_call.1} parent=1 // pred_check_branch
      %821 = sbr.rel (0) target = $region49
    $region48: #{tpu_custom_call.1} parent=1 // pred_region
      %s823 = ssub.s32 16, 16
      %824 = vsyncadd [#allocation4], %s823
      %s826 = sshll.u32 [#allocation11], 4
      %s827 = int_to_ptr.vmem [resolvable:$true] %s826
      %829 = dma.vmem_to_hbm [thread:$0]  %s827, 16, %s6, [#allocation4]
    $region49: #{tpu_custom_call.1} parent=1 // pred_fallthru
      _
    // Predicated region
    $region50: #{tpu_custom_call.1} parent=1 // pred_check
      _
    $region51: #{tpu_custom_call.1} parent=1 // pred_check_branch
      %831 = sbr.rel (0) target = $region53
    $region52: #{tpu_custom_call.1} parent=1 // pred_region
      %832 = dma.done [#allocation4], 16
    $region53: #{tpu_custom_call.1} parent=1 // pred_fallthru
      _
    %833 = vsyncpa [#allocation3], 1
    %834 = vsyncpa [#allocation6], 1
    %835 = vsyncpa [#allocation9], 1
    %836 = vsyncpa [#allocation4], 1

</llo_original>
